<compile_context>
chip_gen: v5e
topology: v5e:2x2
jax: 0.10.0
libtpu: 0.0.40
codegen_flags: <defaults>
</compile_context>

<pallas_src>
from functools import partial

import jax
import jax.numpy as jnp
import numpy as np
from jax.experimental import pallas as pl
from jax.experimental.pallas import tpu as pltpu

OUT_PAD = 128  # lane-dense padded width for the 3-channel recon outputs


# ---------------------------------------------------------------------------
# Fused decoder kernel:
#   fold1: ReLU(gridterm + code1) -> ReLU(@W12+b12) -> (@W13+b13)
#   fold2: ReLU(r1@W21r + code2)  -> ReLU(@W22+b22) -> (@W23+b23)
# With fuse=True the fold1-out / fold2-in boundary is algebraically fused into
# a single (H,H) dot (W_f) and code2 already carries b13 @ W21[:3].
# ---------------------------------------------------------------------------
def _decoder_kernel(fuse, gridterm_ref, code1_ref, code2_ref, *refs):
    if fuse:
        (w12_ref, b12_ref, wf_ref,
         w22_ref, b22_ref, w23_ref, b23_ref, out_ref) = refs
    else:
        (w12_ref, b12_ref, w13_ref, b13_ref, w2r_ref,
         w22_ref, b22_ref, w23_ref, b23_ref, out_ref) = refs

    def mm(a, w_ref):
        # MXU matmul with f32 accumulation; operands cast to the weight dtype
        # (bf16 by default) so only the dots run in reduced precision.
        return jnp.dot(a.astype(w_ref.dtype), w_ref[...],
                       preferred_element_type=jnp.float32)

    # ---- fold 1 ----
    # layer 1: grid term precomputed in XLA (batch-independent), codeword term
    # precomputed per batch element; nothing degenerate hits the MXU here.
    h = jnp.maximum(gridterm_ref[...] + code1_ref[0], 0.0)        # (TILE_M, H)
    h = jnp.maximum(mm(h, w12_ref) + b12_ref[...], 0.0)

    # ---- fold1-out / fold2-in boundary (recon1 never leaves vregs/VMEM) ----
    if fuse:
        h = jnp.maximum(mm(h, wf_ref) + code2_ref[0], 0.0)
    else:
        r1 = mm(h, w13_ref) + b13_ref[...]          # (TILE_M, 128); cols 3: are 0
        h = jnp.maximum(mm(r1, w2r_ref) + code2_ref[0], 0.0)

    # ---- fold 2 tail ----
    h = jnp.maximum(mm(h, w22_ref) + b22_ref[...], 0.0)
    y = mm(h, w23_ref) + b23_ref[...]                              # (TILE_M, 128)

    out_ref[0] = y.astype(out_ref.dtype)                           # lane-dense store


def _round_up(v, n):
    return ((v + n - 1) // n) * n


def _cdiv(a, b):
    return (a + b - 1) // b


def _vmem_limit_bytes(tile, hmax, cd_bytes):
    # Rough estimate: double-buffered weights + streamed gridterm/out blocks +
    # f32 intermediates, with 50% headroom, clamped to fit every generation
    # (v7x has 64 MiB physical VMEM per TensorCore).
    weights = 4 * hmax * max(hmax, OUT_PAD) * cd_bytes
    biases = 4 * max(hmax, OUT_PAD) * 4
    stream = tile * hmax * 4 + tile * OUT_PAD * 4
    inter = 6 * tile * hmax * 4
    est = 2 * (weights + biases + stream) + inter
    return int(min(64 * 1024 * 1024, max(32 * 1024 * 1024, est * 3 // 2)))


# ---------------------------------------------------------------------------
# Decoder forward
# ---------------------------------------------------------------------------
def decoder_forward(x, fold1_params, fold2_params, grid_size, *,
                    tile_m=1024, compute_dtype=jnp.bfloat16,
                    fuse_fold_boundary=True):
    """x: (B, C) global feature. Returns (B, 3, grid_size**2), PyTorch layout.

    fuse_fold_boundary=True is best on v6e/v7x (256^2 MXU); set False on v5e.
    """
    B, C = x.shape
    m = grid_size * grid_size

    (w11, b11), (w12, b12), (w13, b13) = fold1_params
    (w21, b21), (w22, b22), (w23, b23) = fold2_params
    cd = compute_dtype
    H1 = w11.shape[1]        # fold1 hidden
    H3 = w21.shape[1]        # fold2 hidden

    # --- point-axis tiling (8-aligned, minimal padding) ---
    m8 = _round_up(m, 8)
    n_mt = _cdiv(m8, tile_m)
    tile = _round_up(_cdiv(m8, n_mt), 8)
    m_pad = n_mt * tile

    # --- 2-D folding grid + batch-independent fold1 layer-1 term (plain XLA) ---
    lin = jnp.linspace(-0.3, 0.3, grid_size, dtype=jnp.float32)
    grid2 = jnp.stack([jnp.tile(lin, grid_size), jnp.repeat(lin, grid_size)],
                      axis=-1)                                    # (m, 2)
    grid2 = jnp.pad(grid2, ((0, m_pad - m), (0, 0)))
    gridterm = grid2 @ w11[:2]                                    # (m_pad, H1), f32

    # --- per-batch codeword contributions (M=B dots stay in XLA, f32) ---
    code1 = (x @ w11[2:] + b11).reshape(B, 1, H1)                 # (B, 1, H1)
    code2_b = x @ w21[3:] + b21                                   # (B, H3)

    def pad_out(w, b):
        wp = jnp.zeros((w.shape[0], OUT_PAD), jnp.float32).at[:, :w.shape[1]].set(w)
        bp = jnp.zeros((1, OUT_PAD), jnp.float32).at[:, :b.shape[1]].set(b)
        return wp, bp

    w23p, b23p = pad_out(w23, b23)                                # fold2 output conv

    if fuse_fold_boundary:
        wf = w13 @ w21[:3]                                        # (H2, H3)
        code2_b = code2_b + b13 @ w21[:3]
        weights = (w12.astype(cd), b12, wf.astype(cd),
                   w22.astype(cd), b22, w23p.astype(cd), b23p)
    else:
        w13p, b13p = pad_out(w13, b13)                            # fold1 output conv
        w2r = jnp.zeros((OUT_PAD, H3), jnp.float32).at[:3].set(w21[:3])
        weights = (w12.astype(cd), b12, w13p.astype(cd), b13p, w2r.astype(cd),
                   w22.astype(cd), b22, w23p.astype(cd), b23p)

    code2 = code2_b.reshape(B, 1, H3)

    def wspec(a):
        return pl.BlockSpec(a.shape, lambda b, t: (0, 0))

    in_specs = ([pl.BlockSpec((tile, H1), lambda b, t: (t, 0)),
                 pl.BlockSpec((1, 1, H1), lambda b, t: (b, 0, 0)),
                 pl.BlockSpec((1, 1, H3), lambda b, t: (b, 0, 0))]
                + [wspec(w) for w in weights])

    hmax = max(H1, H3, w12.shape[1], w22.shape[1])
    out = pl.pallas_call(
        partial(_decoder_kernel, fuse_fold_boundary),
        out_shape=jax.ShapeDtypeStruct((B, m_pad, OUT_PAD), jnp.float32),
        grid=(B, n_mt),
        in_specs=in_specs,
        out_specs=pl.BlockSpec((1, tile, OUT_PAD), lambda b, t: (b, t, 0)),
        compiler_params=pltpu.CompilerParams(
            dimension_semantics=("parallel", "parallel"),
            vmem_limit_bytes=_vmem_limit_bytes(tile, hmax,
                                               jnp.dtype(cd).itemsize)),
    )(gridterm, code1, code2, *weights)

    # lane-dense padded output -> (B, 3, m) PyTorch layout
    return jnp.transpose(out[:, :m, :3], (0, 2, 1))


# ---------------------------------------------------------------------------
# Parameter setup (plain JAX glue): Conv1d(k=1) weights + folded eval-mode BN
# ---------------------------------------------------------------------------
def init_fold_params(key, in_channel, out_channels, eps=1e-5):
    params = []
    ic = in_channel
    keys = jax.random.split(key, len(out_channels))
    for idx, oc in enumerate(out_channels):
        kw, kb, kg, kbt, km, kv = jax.random.split(keys[idx], 6)
        bound = 1.0 / np.sqrt(ic)
        w = jax.random.uniform(kw, (oc, ic), jnp.float32, -bound, bound)
        b = jax.random.uniform(kb, (oc,), jnp.float32, -bound, bound)
        if idx < len(out_channels) - 1:
            # BatchNorm1d (eval mode) folded into the conv.
            gamma = jax.random.uniform(kg, (oc,), jnp.float32, 0.5, 1.5)
            beta = jax.random.uniform(kbt, (oc,), jnp.float32, -0.5, 0.5)
            mean = jax.random.uniform(km, (oc,), jnp.float32, -0.1, 0.1)
            var = jax.random.uniform(kv, (oc,), jnp.float32, 0.5, 1.5)
            scale = gamma / jnp.sqrt(var + eps)
            w = w * scale[:, None]
            b = (b - mean) * scale + beta
        params.append((jnp.asarray(w).T, jnp.asarray(b).reshape(1, oc)))  # (ic,oc),(1,oc)
        ic = oc
    return params


# ---------------------------------------------------------------------------
# Pure-JAX reference (mirrors the PyTorch concat-based computation)
# ---------------------------------------------------------------------------
def _ref_fold(x_bmc, params):
    (w1, b1), (w2, b2), (w3, b3) = params
    h = jnp.maximum(x_bmc @ w1 + b1, 0.0)
    h = jnp.maximum(h @ w2 + b2, 0.0)
    return h @ w3 + b3


def ref_forward(x, fold1_params, fold2_params, grid_size):
    B, C = x.shape
    m = grid_size * grid_size
    lin = jnp.linspace(-0.3, 0.3, grid_size, dtype=jnp.float32)
    grid2 = jnp.stack([jnp.tile(lin, grid_size), jnp.repeat(lin, grid_size)], axis=-1)
    grid_b = jnp.broadcast_to(grid2[None], (B, m, 2))
    code = jnp.broadcast_to(x[:, None, :], (B, m, C))
    r1 = _ref_fold(jnp.concatenate([grid_b, code], axis=-1), fold1_params)
    r2 = _ref_fold(jnp.concatenate([r1, code], axis=-1), fold2_params)
    return jnp.transpose(r2, (0, 2, 1))


if __name__ == "__main__":
    # Small shapes consistent with the module: batch=2, global feature dim=32,
    # grid_size=4 (m=16), hidden width=128 (lane-aligned stand-in for 512).
    batch = 2
    in_channel = 32
    hidden = 128
    grid_size = 4

    key = jax.random.PRNGKey(0)
    kx, k1, k2 = jax.random.split(key, 3)
    x = jax.random.normal(kx, (batch, in_channel), jnp.float32)

    fold1_params = init_fold_params(k1, in_channel + 2, [hidden, hidden, 3])
    fold2_params = init_fold_params(k2, in_channel + 3, [hidden, hidden, 3])

    ref = jax.block_until_ready(
        ref_forward(x, fold1_params, fold2_params, grid_size))

    # f32, unfused boundary (v5e configuration) — tight check against reference.
    out_f32 = jax.block_until_ready(
        decoder_forward(x, fold1_params, fold2_params, grid_size,
                        compute_dtype=jnp.float32, fuse_fold_boundary=False))
    assert out_f32.shape == (batch, 3, grid_size * grid_size), out_f32.shape
    np.testing.assert_allclose(np.asarray(out_f32), np.asarray(ref),
                               rtol=1e-4, atol=1e-4)

    # f32, fused boundary — reassociation only, still tight.
    out_f32_fused = jax.block_until_ready(
        decoder_forward(x, fold1_params, fold2_params, grid_size,
                        compute_dtype=jnp.float32, fuse_fold_boundary=True))
    np.testing.assert_allclose(np.asarray(out_f32_fused), np.asarray(ref),
                               rtol=1e-4, atol=1e-4)

    # Default path: bf16 MXU operands + fused boundary (v6e/v7x) — loose check.
    out_def = jax.block_until_ready(
        decoder_forward(x, fold1_params, fold2_params, grid_size))
    np.testing.assert_allclose(np.asarray(out_def), np.asarray(ref),
                               rtol=5e-2, atol=5e-2)

    print("KERNEL_OK")
</pallas_src>

<mosaic_0001>
module attributes {stable_mosaic.version = 11 : i64} {
  func.func @_decoder_kernel(%arg0: i32, %arg1: i32, %arg2: memref<16x128xf32, #tpu.memory_space<vmem>>, %arg3: memref<1x1x128xf32, #tpu.memory_space<vmem>>, %arg4: memref<1x1x128xf32, #tpu.memory_space<vmem>>, %arg5: memref<128x128xf32, #tpu.memory_space<vmem>>, %arg6: memref<1x128xf32, #tpu.memory_space<vmem>>, %arg7: memref<128x128xf32, #tpu.memory_space<vmem>>, %arg8: memref<1x128xf32, #tpu.memory_space<vmem>>, %arg9: memref<128x128xf32, #tpu.memory_space<vmem>>, %arg10: memref<128x128xf32, #tpu.memory_space<vmem>>, %arg11: memref<1x128xf32, #tpu.memory_space<vmem>>, %arg12: memref<128x128xf32, #tpu.memory_space<vmem>>, %arg13: memref<1x128xf32, #tpu.memory_space<vmem>>, %arg14: memref<1x16x128xf32, #tpu.memory_space<vmem>>) attributes {dimension_semantics = [#tpu.dimension_semantics<parallel>, #tpu.dimension_semantics<parallel>], iteration_bounds = array<i64: 2, 1>, scalar_prefetch = 0 : i64, scratch_operands = 0 : i64, tpu.core_type = #tpu.core_type<tc>, window_params = [{transform_indices = @transform_0, window_bounds = array<i64: 16, 128>}, {transform_indices = @transform_1, window_bounds = array<i64: 1, 1, 128>}, {transform_indices = @transform_2, window_bounds = array<i64: 1, 1, 128>}, {pipeline_mode = #tpu.pipeline_mode<synchronous>, transform_indices = @transform_3, window_bounds = array<i64: 128, 128>}, {pipeline_mode = #tpu.pipeline_mode<synchronous>, transform_indices = @transform_4, window_bounds = array<i64: 1, 128>}, {pipeline_mode = #tpu.pipeline_mode<synchronous>, transform_indices = @transform_5, window_bounds = array<i64: 128, 128>}, {pipeline_mode = #tpu.pipeline_mode<synchronous>, transform_indices = @transform_6, window_bounds = array<i64: 1, 128>}, {pipeline_mode = #tpu.pipeline_mode<synchronous>, transform_indices = @transform_7, window_bounds = array<i64: 128, 128>}, {pipeline_mode = #tpu.pipeline_mode<synchronous>, transform_indices = @transform_8, window_bounds = array<i64: 128, 128>}, {pipeline_mode = #tpu.pipeline_mode<synchronous>, transform_indices = @transform_9, window_bounds = array<i64: 1, 128>}, {pipeline_mode = #tpu.pipeline_mode<synchronous>, transform_indices = @transform_10, window_bounds = array<i64: 128, 128>}, {pipeline_mode = #tpu.pipeline_mode<synchronous>, transform_indices = @transform_11, window_bounds = array<i64: 1, 128>}, {transform_indices = @transform_12, window_bounds = array<i64: 1, 16, 128>}]} {
    %c0 = arith.constant 0 : index
    %c0_0 = arith.constant 0 : index
    %0 = vector.load %arg2[%c0, %c0_0] : memref<16x128xf32, #tpu.memory_space<vmem>>, vector<16x128xf32>
    %c0_1 = arith.constant 0 : index
    %c0_2 = arith.constant 0 : index
    %c0_3 = arith.constant 0 : index
    %1 = vector.load %arg3[%c0_1, %c0_2, %c0_3] : memref<1x1x128xf32, #tpu.memory_space<vmem>>, vector<1x1x128xf32>
    %2 = vector.shape_cast %1 : vector<1x1x128xf32> to vector<1x128xf32>
    %3 = vector.broadcast %2 : vector<1x128xf32> to vector<16x128xf32>
    %4 = arith.addf %0, %3 : vector<16x128xf32>
    %cst = arith.constant 0.000000e+00 : f32
    %5 = vector.broadcast %cst : f32 to vector<16x128xf32>
    %6 = arith.maximumf %4, %5 : vector<16x128xf32>
    %c0_4 = arith.constant 0 : index
    %c0_5 = arith.constant 0 : index
    %7 = vector.load %arg5[%c0_4, %c0_5] : memref<128x128xf32, #tpu.memory_space<vmem>>, vector<128x128xf32>
    %cst_6 = arith.constant dense<0.000000e+00> : vector<16x128xf32>
    %8 = tpu.matmul %6, %7, %cst_6 {dimension_numbers = #tpu.dot_dimension_numbers<[1], [0], [0], [1], [0, 0, 1, 1], [], []>} : vector<16x128xf32>, vector<128x128xf32>, vector<16x128xf32> -> vector<16x128xf32>
    %c0_7 = arith.constant 0 : index
    %c0_8 = arith.constant 0 : index
    %9 = vector.load %arg6[%c0_7, %c0_8] : memref<1x128xf32, #tpu.memory_space<vmem>>, vector<1x128xf32>
    %10 = vector.broadcast %9 : vector<1x128xf32> to vector<16x128xf32>
    %11 = arith.addf %8, %10 : vector<16x128xf32>
    %cst_9 = arith.constant 0.000000e+00 : f32
    %12 = vector.broadcast %cst_9 : f32 to vector<16x128xf32>
    %13 = arith.maximumf %11, %12 : vector<16x128xf32>
    %c0_10 = arith.constant 0 : index
    %c0_11 = arith.constant 0 : index
    %14 = vector.load %arg7[%c0_10, %c0_11] : memref<128x128xf32, #tpu.memory_space<vmem>>, vector<128x128xf32>
    %cst_12 = arith.constant dense<0.000000e+00> : vector<16x128xf32>
    %15 = tpu.matmul %13, %14, %cst_12 {dimension_numbers = #tpu.dot_dimension_numbers<[1], [0], [0], [1], [0, 0, 1, 1], [], []>} : vector<16x128xf32>, vector<128x128xf32>, vector<16x128xf32> -> vector<16x128xf32>
    %c0_13 = arith.constant 0 : index
    %c0_14 = arith.constant 0 : index
    %16 = vector.load %arg8[%c0_13, %c0_14] : memref<1x128xf32, #tpu.memory_space<vmem>>, vector<1x128xf32>
    %17 = vector.broadcast %16 : vector<1x128xf32> to vector<16x128xf32>
    %18 = arith.addf %15, %17 : vector<16x128xf32>
    %c0_15 = arith.constant 0 : index
    %c0_16 = arith.constant 0 : index
    %19 = vector.load %arg9[%c0_15, %c0_16] : memref<128x128xf32, #tpu.memory_space<vmem>>, vector<128x128xf32>
    %cst_17 = arith.constant dense<0.000000e+00> : vector<16x128xf32>
    %20 = tpu.matmul %18, %19, %cst_17 {dimension_numbers = #tpu.dot_dimension_numbers<[1], [0], [0], [1], [0, 0, 1, 1], [], []>} : vector<16x128xf32>, vector<128x128xf32>, vector<16x128xf32> -> vector<16x128xf32>
    %c0_18 = arith.constant 0 : index
    %c0_19 = arith.constant 0 : index
    %c0_20 = arith.constant 0 : index
    %21 = vector.load %arg4[%c0_18, %c0_19, %c0_20] : memref<1x1x128xf32, #tpu.memory_space<vmem>>, vector<1x1x128xf32>
    %22 = vector.shape_cast %21 : vector<1x1x128xf32> to vector<1x128xf32>
    %23 = vector.broadcast %22 : vector<1x128xf32> to vector<16x128xf32>
    %24 = arith.addf %20, %23 : vector<16x128xf32>
    %cst_21 = arith.constant 0.000000e+00 : f32
    %25 = vector.broadcast %cst_21 : f32 to vector<16x128xf32>
    %26 = arith.maximumf %24, %25 : vector<16x128xf32>
    %c0_22 = arith.constant 0 : index
    %c0_23 = arith.constant 0 : index
    %27 = vector.load %arg10[%c0_22, %c0_23] : memref<128x128xf32, #tpu.memory_space<vmem>>, vector<128x128xf32>
    %cst_24 = arith.constant dense<0.000000e+00> : vector<16x128xf32>
    %28 = tpu.matmul %26, %27, %cst_24 {dimension_numbers = #tpu.dot_dimension_numbers<[1], [0], [0], [1], [0, 0, 1, 1], [], []>} : vector<16x128xf32>, vector<128x128xf32>, vector<16x128xf32> -> vector<16x128xf32>
    %c0_25 = arith.constant 0 : index
    %c0_26 = arith.constant 0 : index
    %29 = vector.load %arg11[%c0_25, %c0_26] : memref<1x128xf32, #tpu.memory_space<vmem>>, vector<1x128xf32>
    %30 = vector.broadcast %29 : vector<1x128xf32> to vector<16x128xf32>
    %31 = arith.addf %28, %30 : vector<16x128xf32>
    %cst_27 = arith.constant 0.000000e+00 : f32
    %32 = vector.broadcast %cst_27 : f32 to vector<16x128xf32>
    %33 = arith.maximumf %31, %32 : vector<16x128xf32>
    %c0_28 = arith.constant 0 : index
    %c0_29 = arith.constant 0 : index
    %34 = vector.load %arg12[%c0_28, %c0_29] : memref<128x128xf32, #tpu.memory_space<vmem>>, vector<128x128xf32>
    %cst_30 = arith.constant dense<0.000000e+00> : vector<16x128xf32>
    %35 = tpu.matmul %33, %34, %cst_30 {dimension_numbers = #tpu.dot_dimension_numbers<[1], [0], [0], [1], [0, 0, 1, 1], [], []>} : vector<16x128xf32>, vector<128x128xf32>, vector<16x128xf32> -> vector<16x128xf32>
    %c0_31 = arith.constant 0 : index
    %c0_32 = arith.constant 0 : index
    %36 = vector.load %arg13[%c0_31, %c0_32] : memref<1x128xf32, #tpu.memory_space<vmem>>, vector<1x128xf32>
    %37 = vector.broadcast %36 : vector<1x128xf32> to vector<16x128xf32>
    %38 = arith.addf %35, %37 : vector<16x128xf32>
    %c0_33 = arith.constant 0 : index
    %c0_34 = arith.constant 0 : index
    %c0_35 = arith.constant 0 : index
    %39 = vector.load %arg14[%c0_33, %c0_34, %c0_35] : memref<1x16x128xf32, #tpu.memory_space<vmem>>, vector<1x16x128xf32>
    %40 = vector.shape_cast %39 : vector<1x16x128xf32> to vector<16x128xf32>
    %41 = vector.shape_cast %38 : vector<16x128xf32> to vector<1x16x128xf32>
    tpu.vector_store %arg14[%c0_33, %c0_34, %c0_35], %41 {strides = array<i32>} : memref<1x16x128xf32, #tpu.memory_space<vmem>>, vector<1x16x128xf32>,
    return
  }
  func.func @transform_0(%arg0: i32, %arg1: i32) -> (i32, i32) {
    %c0_i32 = arith.constant 0 : i32
    %c0_i32_0 = arith.constant 0 : i32
    return %arg1, %c0_i32 : i32, i32
  }
  func.func @transform_1(%arg0: i32, %arg1: i32) -> (i32, i32, i32) {
    %c0_i32 = arith.constant 0 : i32
    %c0_i32_0 = arith.constant 0 : i32
    %c0_i32_1 = arith.constant 0 : i32
    return %arg0, %c0_i32, %c0_i32_0 : i32, i32, i32
  }
  func.func @transform_2(%arg0: i32, %arg1: i32) -> (i32, i32, i32) {
    %c0_i32 = arith.constant 0 : i32
    %c0_i32_0 = arith.constant 0 : i32
    %c0_i32_1 = arith.constant 0 : i32
    return %arg0, %c0_i32, %c0_i32_0 : i32, i32, i32
  }
  func.func @transform_3(%arg0: i32, %arg1: i32) -> (i32, i32) {
    %c0_i32 = arith.constant 0 : i32
    %c0_i32_0 = arith.constant 0 : i32
    %c0_i32_1 = arith.constant 0 : i32
    return %c0_i32, %c0_i32_0 : i32, i32
  }
  func.func @transform_4(%arg0: i32, %arg1: i32) -> (i32, i32) {
    %c0_i32 = arith.constant 0 : i32
    %c0_i32_0 = arith.constant 0 : i32
    %c0_i32_1 = arith.constant 0 : i32
    return %c0_i32, %c0_i32_0 : i32, i32
  }
  func.func @transform_5(%arg0: i32, %arg1: i32) -> (i32, i32) {
    %c0_i32 = arith.constant 0 : i32
    %c0_i32_0 = arith.constant 0 : i32
    %c0_i32_1 = arith.constant 0 : i32
    return %c0_i32, %c0_i32_0 : i32, i32
  }
  func.func @transform_6(%arg0: i32, %arg1: i32) -> (i32, i32) {
    %c0_i32 = arith.constant 0 : i32
    %c0_i32_0 = arith.constant 0 : i32
    %c0_i32_1 = arith.constant 0 : i32
    return %c0_i32, %c0_i32_0 : i32, i32
  }
  func.func @transform_7(%arg0: i32, %arg1: i32) -> (i32, i32) {
    %c0_i32 = arith.constant 0 : i32
    %c0_i32_0 = arith.constant 0 : i32
    %c0_i32_1 = arith.constant 0 : i32
    return %c0_i32, %c0_i32_0 : i32, i32
  }
  func.func @transform_8(%arg0: i32, %arg1: i32) -> (i32, i32) {
    %c0_i32 = arith.constant 0 : i32
    %c0_i32_0 = arith.constant 0 : i32
    %c0_i32_1 = arith.constant 0 : i32
    return %c0_i32, %c0_i32_0 : i32, i32
  }
  func.func @transform_9(%arg0: i32, %arg1: i32) -> (i32, i32) {
    %c0_i32 = arith.constant 0 : i32
    %c0_i32_0 = arith.constant 0 : i32
    %c0_i32_1 = arith.constant 0 : i32
    return %c0_i32, %c0_i32_0 : i32, i32
  }
  func.func @transform_10(%arg0: i32, %arg1: i32) -> (i32, i32) {
    %c0_i32 = arith.constant 0 : i32
    %c0_i32_0 = arith.constant 0 : i32
    %c0_i32_1 = arith.constant 0 : i32
    return %c0_i32, %c0_i32_0 : i32, i32
  }
  func.func @transform_11(%arg0: i32, %arg1: i32) -> (i32, i32) {
    %c0_i32 = arith.constant 0 : i32
    %c0_i32_0 = arith.constant 0 : i32
    %c0_i32_1 = arith.constant 0 : i32
    return %c0_i32, %c0_i32_0 : i32, i32
  }
  func.func @transform_12(%arg0: i32, %arg1: i32) -> (i32, i32, i32) {
    %c0_i32 = arith.constant 0 : i32
    %c0_i32_0 = arith.constant 0 : i32
    return %arg0, %arg1, %c0_i32 : i32, i32, i32
  }
}

</mosaic_0001>

<llo_original>
// kernel: tpu_custom_call.1
$region0: #{tpu_custom_call.1}
  #allocation0 [shape = 'u32[]', space=smem, size = 0x4, offset = 0x4, fixed_abs, tag = 'smem constant byte address 0x4 - core index']
  #allocation1 [shape = 'u32[72,128]{1,0:T(1,128)}', space=vmem, size = 0x9000, scoped, tag = 'internal scratch']
  %s0 = inlined_call_operand.hbm [shape: f32[16,128], index: 0, kind: input, shape index: {}]
  %s1 = inlined_call_operand.hbm [shape: f32[2,1,128], index: 1, kind: input, shape index: {}]
  %s2 = inlined_call_operand.hbm [shape: f32[2,1,128], index: 2, kind: input, shape index: {}]
  %s3 = inlined_call_operand.hbm [shape: f32[128,128], index: 3, kind: input, shape index: {}]
  %s4 = inlined_call_operand.vmem [shape: f32[1,128], index: 4, kind: input, shape index: {}]
  %s5 = inlined_call_operand.hbm [shape: f32[128,128], index: 5, kind: input, shape index: {}]
  %s6 = inlined_call_operand.vmem [shape: f32[1,128], index: 6, kind: input, shape index: {}]
  %s7 = inlined_call_operand.hbm [shape: f32[128,128], index: 7, kind: input, shape index: {}]
  %s8 = inlined_call_operand.hbm [shape: f32[128,128], index: 8, kind: input, shape index: {}]
  %s9 = inlined_call_operand.vmem [shape: f32[1,128], index: 9, kind: input, shape index: {}]
  %s10 = inlined_call_operand.hbm [shape: f32[128,128], index: 10, kind: input, shape index: {}]
  %s11 = inlined_call_operand.vmem [shape: f32[1,128], index: 11, kind: input, shape index: {}]
  %s12 = inlined_call_operand.hbm [shape: f32[2,16,128], index: 12, kind: output, shape index: {}]
  %s13 = sld [smem:[#allocation0]]
  $region113: #{tpu_custom_call.1} parent=0
    _
  %s15 = ssub.s32 1, %s13
  %s16 = scalar_select 0, %s15, %s13
  $region1: #{tpu_custom_call.1} parent=0
    #allocation2 [shape = 'u8[8192]{0}', space=vmem, size = 0x2000, scoped, tag = 'input window, operand 0, single buffered']
    #allocation3 [shape = 's32[2]{0}', space=sflag, size = 0x8, scoped, tag = 'scoped memory for tpu_custom_call.1']
    #allocation4 [shape = 's32[2]{0}', space=sflag, size = 0x8, scoped, tag = 'scoped memory for tpu_custom_call.1']
    #allocation5 [shape = 'u8[1024]{0}', space=vmem, size = 0x400, scoped, tag = 'input window, operand 1']
    #allocation6 [shape = 's32[2]{0}', space=sflag, size = 0x8, scoped, tag = 'scoped memory for tpu_custom_call.1']
    #allocation7 [shape = 'u8[1024]{0}', space=vmem, size = 0x400, scoped, tag = 'input window, operand 2']
    #allocation8 [shape = 'u8[65536]{0}', space=vmem, size = 0x10000, scoped, tag = 'input window, operand 3, single buffered']
    #allocation9 [shape = 's32[1]{0}', space=sflag, size = 0x4, scoped, tag = 'scoped memory for tpu_custom_call.1']
    #allocation10 [shape = 'u8[65536]{0}', space=vmem, size = 0x10000, scoped, tag = 'input window, operand 5, single buffered']
    #allocation11 [shape = 'u8[65536]{0}', space=vmem, size = 0x10000, scoped, tag = 'input window, operand 7, single buffered']
    #allocation12 [shape = 's32[1]{0}', space=sflag, size = 0x4, scoped, tag = 'scoped memory for tpu_custom_call.1']
    #allocation13 [shape = 'u8[65536]{0}', space=vmem, size = 0x10000, scoped, tag = 'input window, operand 8, single buffered']
    #allocation14 [shape = 'u8[65536]{0}', space=vmem, size = 0x10000, scoped, tag = 'input window, operand 10, single buffered']
    #allocation15 [shape = 's32[1]{0}', space=sflag, size = 0x4, scoped, tag = 'scoped memory for tpu_custom_call.1']
    #allocation16 [shape = 'u8[16384]{0}', space=vmem, size = 0x4000, scoped, tag = 'output window, operand 0']
    %17 = vsyncpa [#allocation3], 0
    %18 = vsyncpa [#allocation6], 0
    %s19 = scalar_lea.sflag [#allocation6], 1
    %20 = vsyncpa %s19, 0
    %21 = vsyncpa [#allocation9], 0
    %22 = vsyncpa [#allocation12], 0
    %23 = vsyncpa [#allocation15], 0
    %24 = vsyncpa [#allocation4], 0
    %s25 = scalar_lea.sflag [#allocation4], 1
    %26 = vsyncpa %s25, 0
    loop: start=0, step=1, limit=4
    $region2: #{tpu_custom_call.1} parent=1 // loop_pre_header
      _
    $region3: #{tpu_custom_call.1} parent=1 // loop_header
      %s28 = sphi 0, %s32
      %p29 = scmp.ge.s32.totalorder %s28, 4
      %s35 = sphi 0, %s47
      %s36 = sphi 0, %s43
      %s37 = sphi 0, %s35
      %s38 = sphi 0, %s36
      %s39 = sphi 0, %s37
      %s40 = sphi 0, %s38
      %s50 = sphi 0, %s52
      %s53 = sphi 0, %s50
      %s54 = sphi 0, %s53
      %s70 = sphi 0, %s54
      %s76 = sphi 0, %s78
      %s79 = sphi 0, %s76
      %s80 = sphi 0, %s79
      %s96 = sphi 0, %s80
      %s102 = sphi 0, %s104
      %s105 = sphi 0, %s102
      %s106 = sphi 0, %s105
      %s122 = sphi 0, %s106
      %s126 = sphi 0, %s126
      %s128 = sphi 0, %s126
      %s129 = sphi 0, %s128
      %s143 = sphi 0, %s129
      %s147 = sphi 0, %s147
      %s149 = sphi 0, %s147
      %s150 = sphi 0, %s149
      %s164 = sphi 0, %s150
      %s168 = sphi 0, %s168
      %s170 = sphi 0, %s168
      %s171 = sphi 0, %s170
      %s185 = sphi 0, %s171
      %s189 = sphi 0, %s189
      %s191 = sphi 0, %s189
      %s192 = sphi 0, %s191
      %s206 = sphi 0, %s192
      %s210 = sphi 0, %s210
      %s212 = sphi 0, %s210
      %s213 = sphi 0, %s212
      %s227 = sphi 0, %s213
      %s231 = sphi 0, %s231
      %s233 = sphi 0, %s231
      %s234 = sphi 0, %s233
      %s248 = sphi 0, %s234
      %s252 = sphi 0, %s252
      %s254 = sphi 0, %s252
      %s255 = sphi 0, %s254
      %s269 = sphi 0, %s255
      %s273 = sphi 0, %s273
      %s275 = sphi 0, %s273
      %s276 = sphi 0, %s275
      %s290 = sphi 0, %s276
      %s294 = sphi 0, %s294
      %s296 = sphi 0, %s294
      %s297 = sphi 0, %s296
      %s311 = sphi 0, %s297
      %s319 = sphi 0, %s321
      %s322 = sphi 0, %s319
      %s323 = sphi 0, %s322
      %s339 = sphi 0, %s323
    $region4: #{tpu_custom_call.1} parent=1 // loop_header_branch
      %31 = sbr.rel (%p29) target = $region8
    $region5: #{tpu_custom_call.1} parent=1 // loop_body
      %s33 = ssub.s32 %s28, 1
      %s34 = ssub.s32 %s28, 2
      %s41 = sadd.s32 1, %s36
      %p42 = scmp.ge.s32.totalorder %s41, 1
      %s43 = scalar_select %p42, 0, %s41
      %s44 = sadd.s32 1, %s35
      %s45 = scalar_select %p42, %s44, %s35
      %p46 = scmp.ge.s32.totalorder %s45, 2
      %s47 = scalar_select %p46, 0, %s45
      %s48 = ssub.s32 %s36, %s43
      %p49 = scmp.eq.s32.totalorder %s48, 0
      %s51 = sadd.s32 %s50, 1
      %s52 = scalar_select %p49, %s50, %s51
      %p55 = pneg %p49
      %p56 = scmp.eq.s32.totalorder %s28, 1
      %p57 = por %p55, %p56
      %p58 = scmp.ne.s32.totalorder %s50, %s53
      %p59 = scmp.eq.s32.totalorder %s28, 0
      %p60 = por %p58, %p59
      %p61 = scmp.ne.s32.totalorder %s50, %s53
      %p62 = scmp.eq.s32.totalorder %s33, 1
      %p63 = por %p61, %p62
      %p64 = scmp.ne.s32.totalorder %s53, %s54
      %p65 = scmp.eq.s32.totalorder %s33, 0
      %p66 = por %p64, %p65
      %p67 = scmp.ne.s32.totalorder %s53, %s54
      %p68 = scmp.eq.s32.totalorder %s34, 1
      %p69 = por %p67, %p68
      %p71 = scmp.ne.s32.totalorder %s54, %s70
      %p72 = scmp.eq.s32.totalorder %s34, 0
      %p73 = por %p71, %p72
      %s74 = ssub.s32 %s35, %s47
      %p75 = scmp.eq.s32.totalorder %s74, 0
      %s77 = sadd.s32 %s76, 1
      %s78 = scalar_select %p75, %s76, %s77
      %p81 = pneg %p75
      %p82 = scmp.eq.s32.totalorder %s28, 1
      %p83 = por %p81, %p82
      %p84 = scmp.ne.s32.totalorder %s76, %s79
      %p85 = scmp.eq.s32.totalorder %s28, 0
      %p86 = por %p84, %p85
      %p87 = scmp.ne.s32.totalorder %s76, %s79
      %p88 = scmp.eq.s32.totalorder %s33, 1
      %p89 = por %p87, %p88
      %p90 = scmp.ne.s32.totalorder %s79, %s80
      %p91 = scmp.eq.s32.totalorder %s33, 0
      %p92 = por %p90, %p91
      %p93 = scmp.ne.s32.totalorder %s79, %s80
      %p94 = scmp.eq.s32.totalorder %s34, 1
      %p95 = por %p93, %p94
      %p97 = scmp.ne.s32.totalorder %s80, %s96
      %p98 = scmp.eq.s32.totalorder %s34, 0
      %p99 = por %p97, %p98
      %s100 = ssub.s32 %s35, %s47
      %p101 = scmp.eq.s32.totalorder %s100, 0
      %s103 = sadd.s32 %s102, 1
      %s104 = scalar_select %p101, %s102, %s103
      %p107 = pneg %p101
      %p108 = scmp.eq.s32.totalorder %s28, 1
      %p109 = por %p107, %p108
      %p110 = scmp.ne.s32.totalorder %s102, %s105
      %p111 = scmp.eq.s32.totalorder %s28, 0
      %p112 = por %p110, %p111
      %p113 = scmp.ne.s32.totalorder %s102, %s105
      %p114 = scmp.eq.s32.totalorder %s33, 1
      %p115 = por %p113, %p114
      %p116 = scmp.ne.s32.totalorder %s105, %s106
      %p117 = scmp.eq.s32.totalorder %s33, 0
      %p118 = por %p116, %p117
      %p119 = scmp.ne.s32.totalorder %s105, %s106
      %p120 = scmp.eq.s32.totalorder %s34, 1
      %p121 = por %p119, %p120
      %p123 = scmp.ne.s32.totalorder %s106, %s122
      %p124 = scmp.eq.s32.totalorder %s34, 0
      %p125 = por %p123, %p124
      %s127 = sadd.s32 %s126, 1
      %p130 = scmp.eq.s32.totalorder %s28, 1
      %p131 = scmp.ne.s32.totalorder %s126, %s128
      %p132 = scmp.eq.s32.totalorder %s28, 0
      %p133 = por %p131, %p132
      %p134 = scmp.ne.s32.totalorder %s126, %s128
      %p135 = scmp.eq.s32.totalorder %s33, 1
      %p136 = por %p134, %p135
      %p137 = scmp.ne.s32.totalorder %s128, %s129
      %p138 = scmp.eq.s32.totalorder %s33, 0
      %p139 = por %p137, %p138
      %p140 = scmp.ne.s32.totalorder %s128, %s129
      %p141 = scmp.eq.s32.totalorder %s34, 1
      %p142 = por %p140, %p141
      %p144 = scmp.ne.s32.totalorder %s129, %s143
      %p145 = scmp.eq.s32.totalorder %s34, 0
      %p146 = por %p144, %p145
      %s148 = sadd.s32 %s147, 1
      %p151 = scmp.eq.s32.totalorder %s28, 1
      %p152 = scmp.ne.s32.totalorder %s147, %s149
      %p153 = scmp.eq.s32.totalorder %s28, 0
      %p154 = por %p152, %p153
      %p155 = scmp.ne.s32.totalorder %s147, %s149
      %p156 = scmp.eq.s32.totalorder %s33, 1
      %p157 = por %p155, %p156
      %p158 = scmp.ne.s32.totalorder %s149, %s150
      %p159 = scmp.eq.s32.totalorder %s33, 0
      %p160 = por %p158, %p159
      %p161 = scmp.ne.s32.totalorder %s149, %s150
      %p162 = scmp.eq.s32.totalorder %s34, 1
      %p163 = por %p161, %p162
      %p165 = scmp.ne.s32.totalorder %s150, %s164
      %p166 = scmp.eq.s32.totalorder %s34, 0
      %p167 = por %p165, %p166
      %s169 = sadd.s32 %s168, 1
      %p172 = scmp.eq.s32.totalorder %s28, 1
      %p173 = scmp.ne.s32.totalorder %s168, %s170
      %p174 = scmp.eq.s32.totalorder %s28, 0
      %p175 = por %p173, %p174
      %p176 = scmp.ne.s32.totalorder %s168, %s170
      %p177 = scmp.eq.s32.totalorder %s33, 1
      %p178 = por %p176, %p177
      %p179 = scmp.ne.s32.totalorder %s170, %s171
      %p180 = scmp.eq.s32.totalorder %s33, 0
      %p181 = por %p179, %p180
      %p182 = scmp.ne.s32.totalorder %s170, %s171
      %p183 = scmp.eq.s32.totalorder %s34, 1
      %p184 = por %p182, %p183
      %p186 = scmp.ne.s32.totalorder %s171, %s185
      %p187 = scmp.eq.s32.totalorder %s34, 0
      %p188 = por %p186, %p187
      %s190 = sadd.s32 %s189, 1
      %p193 = scmp.eq.s32.totalorder %s28, 1
      %p194 = scmp.ne.s32.totalorder %s189, %s191
      %p195 = scmp.eq.s32.totalorder %s28, 0
      %p196 = por %p194, %p195
      %p197 = scmp.ne.s32.totalorder %s189, %s191
      %p198 = scmp.eq.s32.totalorder %s33, 1
      %p199 = por %p197, %p198
      %p200 = scmp.ne.s32.totalorder %s191, %s192
      %p201 = scmp.eq.s32.totalorder %s33, 0
      %p202 = por %p200, %p201
      %p203 = scmp.ne.s32.totalorder %s191, %s192
      %p204 = scmp.eq.s32.totalorder %s34, 1
      %p205 = por %p203, %p204
      %p207 = scmp.ne.s32.totalorder %s192, %s206
      %p208 = scmp.eq.s32.totalorder %s34, 0
      %p209 = por %p207, %p208
      %s211 = sadd.s32 %s210, 1
      %p214 = scmp.eq.s32.totalorder %s28, 1
      %p215 = scmp.ne.s32.totalorder %s210, %s212
      %p216 = scmp.eq.s32.totalorder %s28, 0
      %p217 = por %p215, %p216
      %p218 = scmp.ne.s32.totalorder %s210, %s212
      %p219 = scmp.eq.s32.totalorder %s33, 1
      %p220 = por %p218, %p219
      %p221 = scmp.ne.s32.totalorder %s212, %s213
      %p222 = scmp.eq.s32.totalorder %s33, 0
      %p223 = por %p221, %p222
      %p224 = scmp.ne.s32.totalorder %s212, %s213
      %p225 = scmp.eq.s32.totalorder %s34, 1
      %p226 = por %p224, %p225
      %p228 = scmp.ne.s32.totalorder %s213, %s227
      %p229 = scmp.eq.s32.totalorder %s34, 0
      %p230 = por %p228, %p229
      %s232 = sadd.s32 %s231, 1
      %p235 = scmp.eq.s32.totalorder %s28, 1
      %p236 = scmp.ne.s32.totalorder %s231, %s233
      %p237 = scmp.eq.s32.totalorder %s28, 0
      %p238 = por %p236, %p237
      %p239 = scmp.ne.s32.totalorder %s231, %s233
      %p240 = scmp.eq.s32.totalorder %s33, 1
      %p241 = por %p239, %p240
      %p242 = scmp.ne.s32.totalorder %s233, %s234
      %p243 = scmp.eq.s32.totalorder %s33, 0
      %p244 = por %p242, %p243
      %p245 = scmp.ne.s32.totalorder %s233, %s234
      %p246 = scmp.eq.s32.totalorder %s34, 1
      %p247 = por %p245, %p246
      %p249 = scmp.ne.s32.totalorder %s234, %s248
      %p250 = scmp.eq.s32.totalorder %s34, 0
      %p251 = por %p249, %p250
      %s253 = sadd.s32 %s252, 1
      %p256 = scmp.eq.s32.totalorder %s28, 1
      %p257 = scmp.ne.s32.totalorder %s252, %s254
      %p258 = scmp.eq.s32.totalorder %s28, 0
      %p259 = por %p257, %p258
      %p260 = scmp.ne.s32.totalorder %s252, %s254
      %p261 = scmp.eq.s32.totalorder %s33, 1
      %p262 = por %p260, %p261
      %p263 = scmp.ne.s32.totalorder %s254, %s255
      %p264 = scmp.eq.s32.totalorder %s33, 0
      %p265 = por %p263, %p264
      %p266 = scmp.ne.s32.totalorder %s254, %s255
      %p267 = scmp.eq.s32.totalorder %s34, 1
      %p268 = por %p266, %p267
      %p270 = scmp.ne.s32.totalorder %s255, %s269
      %p271 = scmp.eq.s32.totalorder %s34, 0
      %p272 = por %p270, %p271
      %s274 = sadd.s32 %s273, 1
      %p277 = scmp.eq.s32.totalorder %s28, 1
      %p278 = scmp.ne.s32.totalorder %s273, %s275
      %p279 = scmp.eq.s32.totalorder %s28, 0
      %p280 = por %p278, %p279
      %p281 = scmp.ne.s32.totalorder %s273, %s275
      %p282 = scmp.eq.s32.totalorder %s33, 1
      %p283 = por %p281, %p282
      %p284 = scmp.ne.s32.totalorder %s275, %s276
      %p285 = scmp.eq.s32.totalorder %s33, 0
      %p286 = por %p284, %p285
      %p287 = scmp.ne.s32.totalorder %s275, %s276
      %p288 = scmp.eq.s32.totalorder %s34, 1
      %p289 = por %p287, %p288
      %p291 = scmp.ne.s32.totalorder %s276, %s290
      %p292 = scmp.eq.s32.totalorder %s34, 0
      %p293 = por %p291, %p292
      %s295 = sadd.s32 %s294, 1
      %p298 = scmp.eq.s32.totalorder %s28, 1
      %p299 = scmp.ne.s32.totalorder %s294, %s296
      %p300 = scmp.eq.s32.totalorder %s28, 0
      %p301 = por %p299, %p300
      %p302 = scmp.ne.s32.totalorder %s294, %s296
      %p303 = scmp.eq.s32.totalorder %s33, 1
      %p304 = por %p302, %p303
      %p305 = scmp.ne.s32.totalorder %s296, %s297
      %p306 = scmp.eq.s32.totalorder %s33, 0
      %p307 = por %p305, %p306
      %p308 = scmp.ne.s32.totalorder %s296, %s297
      %p309 = scmp.eq.s32.totalorder %s34, 1
      %p310 = por %p308, %p309
      %p312 = scmp.ne.s32.totalorder %s297, %s311
      %p313 = scmp.eq.s32.totalorder %s34, 0
      %p314 = por %p312, %p313
      %s315 = ssub.s32 %s35, %s47
      %s316 = ssub.s32 %s36, %s43
      %s317 = sor.u32 %s315, %s316
      %p318 = scmp.eq.s32.totalorder %s317, 0
      %s320 = sadd.s32 %s319, 1
      %s321 = scalar_select %p318, %s319, %s320
      %p324 = pneg %p318
      %p325 = scmp.eq.s32.totalorder %s28, 1
      %p326 = por %p324, %p325
      %p327 = scmp.ne.s32.totalorder %s319, %s322
      %p328 = scmp.eq.s32.totalorder %s28, 0
      %p329 = por %p327, %p328
      %p330 = scmp.ne.s32.totalorder %s319, %s322
      %p331 = scmp.eq.s32.totalorder %s33, 1
      %p332 = por %p330, %p331
      %p333 = scmp.ne.s32.totalorder %s322, %s323
      %p334 = scmp.eq.s32.totalorder %s33, 0
      %p335 = por %p333, %p334
      %p336 = scmp.ne.s32.totalorder %s322, %s323
      %p337 = scmp.eq.s32.totalorder %s34, 1
      %p338 = por %p336, %p337
      %p340 = scmp.ne.s32.totalorder %s323, %s339
      %p341 = scmp.eq.s32.totalorder %s34, 0
      %p342 = por %p340, %p341
      %p343 = scmp.le.s32.totalorder 1, %s28
      %p344 = scmp.lt.s32.totalorder %s28, 3
      %p345 = pnand %p343, %p344
      %p346 = pneg %p345
      // Predicated region
      $region9: #{tpu_custom_call.1} parent=5 // pred_check
        _
      $region10: #{tpu_custom_call.1} parent=5 // pred_check_branch
        %348 = sbr.rel (%p345) target = $region12
      $region11: #{tpu_custom_call.1} parent=5 // pred_region
        %s349 = ssub.s32 %s28, 1
        // Predicated region
        $region13: #{tpu_custom_call.1} parent=11 // pred_check
          %p350 = pneg %p66
        $region14: #{tpu_custom_call.1} parent=11 // pred_check_branch
          %352 = sbr.rel (%p350) target = $region16
        $region15: #{tpu_custom_call.1} parent=11 // pred_region
          %s353 = smul.u32 2, %s38
          %355 = vsyncadd [#allocation3], 0
          %s356 = smul.addr %s353, 8
          %s357 = scalar_lea.hbm %s0, %s356
          %s358 = sshll.u32 %s357, 4
          %s359 = int_to_ptr.hbm [resolvable:$true] %s358
          %s360 = sshll.u32 [#allocation2], 4
          %s361 = int_to_ptr.vmem [resolvable:$true] %s360
          %366 = dma.hbm_to_vmem [thread:$0]  %s359, 256, %s361, [#allocation3], 128, 128, 8
        $region16: #{tpu_custom_call.1} parent=11 // pred_fallthru
          _
        // Predicated region
        $region17: #{tpu_custom_call.1} parent=11 // pred_check
          %p367 = pneg %p139
        $region18: #{tpu_custom_call.1} parent=11 // pred_check_branch
          %369 = sbr.rel (%p367) target = $region20
        $region19: #{tpu_custom_call.1} parent=11 // pred_region
          %371 = vsyncadd [#allocation9], 0
          %s372 = sshll.u32 %s3, 4
          %s373 = int_to_ptr.hbm [resolvable:$true] %s372
          %s374 = sshll.u32 [#allocation8], 4
          %s375 = int_to_ptr.vmem [resolvable:$true] %s374
          %380 = dma.hbm_to_vmem [thread:$0]  %s373, 2048, %s375, [#allocation9], 128, 128, 8
        $region20: #{tpu_custom_call.1} parent=11 // pred_fallthru
          _
        // Predicated region
        $region21: #{tpu_custom_call.1} parent=11 // pred_check
          %p381 = pneg %p160
        $region22: #{tpu_custom_call.1} parent=11 // pred_check_branch
          %383 = sbr.rel (%p381) target = $region24
        $region23: #{tpu_custom_call.1} parent=11 // pred_region
          _
        $region24: #{tpu_custom_call.1} parent=11 // pred_fallthru
          _
        // Predicated region
        $region25: #{tpu_custom_call.1} parent=11 // pred_check
          %p384 = pneg %p181
        $region26: #{tpu_custom_call.1} parent=11 // pred_check_branch
          %386 = sbr.rel (%p384) target = $region28
        $region27: #{tpu_custom_call.1} parent=11 // pred_region
          %388 = vsyncadd [#allocation9], 0
          %s389 = sshll.u32 %s5, 4
          %s390 = int_to_ptr.hbm [resolvable:$true] %s389
          %s391 = sshll.u32 [#allocation10], 4
          %s392 = int_to_ptr.vmem [resolvable:$true] %s391
          %397 = dma.hbm_to_vmem [thread:$0]  %s390, 2048, %s392, [#allocation9], 128, 128, 8
        $region28: #{tpu_custom_call.1} parent=11 // pred_fallthru
          _
        // Predicated region
        $region29: #{tpu_custom_call.1} parent=11 // pred_check
          %p398 = pneg %p202
        $region30: #{tpu_custom_call.1} parent=11 // pred_check_branch
          %400 = sbr.rel (%p398) target = $region32
        $region31: #{tpu_custom_call.1} parent=11 // pred_region
          _
        $region32: #{tpu_custom_call.1} parent=11 // pred_fallthru
          _
        // Predicated region
        $region33: #{tpu_custom_call.1} parent=11 // pred_check
          %p401 = pneg %p223
        $region34: #{tpu_custom_call.1} parent=11 // pred_check_branch
          %403 = sbr.rel (%p401) target = $region36
        $region35: #{tpu_custom_call.1} parent=11 // pred_region
          %405 = vsyncadd [#allocation12], 0
          %s406 = sshll.u32 %s7, 4
          %s407 = int_to_ptr.hbm [resolvable:$true] %s406
          %s408 = sshll.u32 [#allocation11], 4
          %s409 = int_to_ptr.vmem [resolvable:$true] %s408
          %414 = dma.hbm_to_vmem [thread:$0]  %s407, 2048, %s409, [#allocation12], 128, 128, 8
        $region36: #{tpu_custom_call.1} parent=11 // pred_fallthru
          _
        // Predicated region
        $region37: #{tpu_custom_call.1} parent=11 // pred_check
          %p415 = pneg %p244
        $region38: #{tpu_custom_call.1} parent=11 // pred_check_branch
          %417 = sbr.rel (%p415) target = $region40
        $region39: #{tpu_custom_call.1} parent=11 // pred_region
          %419 = vsyncadd [#allocation12], 0
          %s420 = sshll.u32 %s8, 4
          %s421 = int_to_ptr.hbm [resolvable:$true] %s420
          %s422 = sshll.u32 [#allocation13], 4
          %s423 = int_to_ptr.vmem [resolvable:$true] %s422
          %428 = dma.hbm_to_vmem [thread:$0]  %s421, 2048, %s423, [#allocation12], 128, 128, 8
        $region40: #{tpu_custom_call.1} parent=11 // pred_fallthru
          _
        // Predicated region
        $region41: #{tpu_custom_call.1} parent=11 // pred_check
          %p429 = pneg %p265
        $region42: #{tpu_custom_call.1} parent=11 // pred_check_branch
          %431 = sbr.rel (%p429) target = $region44
        $region43: #{tpu_custom_call.1} parent=11 // pred_region
          _
        $region44: #{tpu_custom_call.1} parent=11 // pred_fallthru
          _
        // Predicated region
        $region45: #{tpu_custom_call.1} parent=11 // pred_check
          %p432 = pneg %p286
        $region46: #{tpu_custom_call.1} parent=11 // pred_check_branch
          %434 = sbr.rel (%p432) target = $region48
        $region47: #{tpu_custom_call.1} parent=11 // pred_region
          %436 = vsyncadd [#allocation15], 0
          %s437 = sshll.u32 %s10, 4
          %s438 = int_to_ptr.hbm [resolvable:$true] %s437
          %s439 = sshll.u32 [#allocation14], 4
          %s440 = int_to_ptr.vmem [resolvable:$true] %s439
          %445 = dma.hbm_to_vmem [thread:$0]  %s438, 2048, %s440, [#allocation15], 128, 128, 8
        $region48: #{tpu_custom_call.1} parent=11 // pred_fallthru
          _
        // Predicated region
        $region49: #{tpu_custom_call.1} parent=11 // pred_check
          %p446 = pneg %p307
        $region50: #{tpu_custom_call.1} parent=11 // pred_check_branch
          %448 = sbr.rel (%p446) target = $region52
        $region51: #{tpu_custom_call.1} parent=11 // pred_region
          _
        $region52: #{tpu_custom_call.1} parent=11 // pred_fallthru
          _
      $region12: #{tpu_custom_call.1} parent=5 // pred_fallthru
        _
      %p449 = scmp.lt.s32.totalorder %s28, 2
      // Predicated region
      $region53: #{tpu_custom_call.1} parent=5 // pred_check
        %p450 = pneg %p449
      $region54: #{tpu_custom_call.1} parent=5 // pred_check_branch
        %452 = sbr.rel (%p450) target = $region56
      $region55: #{tpu_custom_call.1} parent=5 // pred_region
        // Predicated region
        $region57: #{tpu_custom_call.1} parent=55 // pred_check
          %p453 = pneg %p86
        $region58: #{tpu_custom_call.1} parent=55 // pred_check_branch
          %455 = sbr.rel (%p453) target = $region60
        $region59: #{tpu_custom_call.1} parent=55 // pred_region
          %s456 = sand.u32 %s28, 1
          %s457 = scalar_lea.sflag [#allocation6], %s456
          %s458 = sand.u32 %s76, 1
          %s459 = scalar_lea.vmem [#allocation5], %s458
          %461 = vsyncadd %s457, 0
          %s462 = scalar_lea.hbm %s1, %s35
          %s464 = sshll.u32 %s462, 4
          %s465 = int_to_ptr.hbm [resolvable:$true] %s464
          %s466 = sshll.u32 %s459, 4
          %s467 = int_to_ptr.vmem [resolvable:$true] %s466
          %469 = dma.hbm_to_vmem [thread:$0]  %s465, 16, %s467, %s457
        $region60: #{tpu_custom_call.1} parent=55 // pred_fallthru
          _
        // Predicated region
        $region61: #{tpu_custom_call.1} parent=55 // pred_check
          %p470 = pneg %p112
        $region62: #{tpu_custom_call.1} parent=55 // pred_check_branch
          %472 = sbr.rel (%p470) target = $region64
        $region63: #{tpu_custom_call.1} parent=55 // pred_region
          %s473 = sand.u32 %s28, 1
          %s474 = scalar_lea.sflag [#allocation6], %s473
          %s475 = sand.u32 %s102, 1
          %s476 = scalar_lea.vmem [#allocation7], %s475
          %478 = vsyncadd %s474, 0
          %s479 = scalar_lea.hbm %s2, %s35
          %s481 = sshll.u32 %s479, 4
          %s482 = int_to_ptr.hbm [resolvable:$true] %s481
          %s483 = sshll.u32 %s476, 4
          %s484 = int_to_ptr.vmem [resolvable:$true] %s483
          %486 = dma.hbm_to_vmem [thread:$0]  %s482, 16, %s484, %s474
        $region64: #{tpu_custom_call.1} parent=55 // pred_fallthru
          _
      $region56: #{tpu_custom_call.1} parent=5 // pred_fallthru
        _
      %p487 = scmp.le.s32.totalorder 1, %s28
      %p488 = scmp.lt.s32.totalorder %s28, 3
      %p489 = pnand %p487, %p488
      %p490 = pneg %p489
      // Predicated region
      $region65: #{tpu_custom_call.1} parent=5 // pred_check
        _
      $region66: #{tpu_custom_call.1} parent=5 // pred_check_branch
        %492 = sbr.rel (%p489) target = $region68
      $region67: #{tpu_custom_call.1} parent=5 // pred_region
        %s493 = ssub.s32 %s28, 1
        // Predicated region
        $region69: #{tpu_custom_call.1} parent=67 // pred_check
          %p494 = pneg %p66
        $region70: #{tpu_custom_call.1} parent=67 // pred_check_branch
          %496 = sbr.rel (%p494) target = $region72
        $region71: #{tpu_custom_call.1} parent=67 // pred_region
          %498 = dma.done [#allocation3], 256
        $region72: #{tpu_custom_call.1} parent=67 // pred_fallthru
          _
        %s499 = sand.u32 %s33, 1
        %s500 = scalar_lea.sflag [#allocation6], %s499
        %s501 = sand.u32 %s79, 1
        %s502 = scalar_lea.vmem [#allocation5], %s501
        // Predicated region
        $region73: #{tpu_custom_call.1} parent=67 // pred_check
          %p503 = pneg %p92
        $region74: #{tpu_custom_call.1} parent=67 // pred_check_branch
          %505 = sbr.rel (%p503) target = $region76
        $region75: #{tpu_custom_call.1} parent=67 // pred_region
          %507 = dma.done %s500, 16
        $region76: #{tpu_custom_call.1} parent=67 // pred_fallthru
          _
        %s508 = sand.u32 %s33, 1
        %s509 = scalar_lea.sflag [#allocation6], %s508
        %s510 = sand.u32 %s105, 1
        %s511 = scalar_lea.vmem [#allocation7], %s510
        // Predicated region
        $region77: #{tpu_custom_call.1} parent=67 // pred_check
          %p512 = pneg %p118
        $region78: #{tpu_custom_call.1} parent=67 // pred_check_branch
          %514 = sbr.rel (%p512) target = $region80
        $region79: #{tpu_custom_call.1} parent=67 // pred_region
          %516 = dma.done %s509, 16
        $region80: #{tpu_custom_call.1} parent=67 // pred_fallthru
          _
        // Predicated region
        $region81: #{tpu_custom_call.1} parent=67 // pred_check
          %p517 = pneg %p139
        $region82: #{tpu_custom_call.1} parent=67 // pred_check_branch
          %519 = sbr.rel (%p517) target = $region84
        $region83: #{tpu_custom_call.1} parent=67 // pred_region
          %521 = dma.done [#allocation9], 2048
        $region84: #{tpu_custom_call.1} parent=67 // pred_fallthru
          _
        // Predicated region
        $region85: #{tpu_custom_call.1} parent=67 // pred_check
          %p522 = pneg %p181
        $region86: #{tpu_custom_call.1} parent=67 // pred_check_branch
          %524 = sbr.rel (%p522) target = $region88
        $region87: #{tpu_custom_call.1} parent=67 // pred_region
          %526 = dma.done [#allocation9], 2048
        $region88: #{tpu_custom_call.1} parent=67 // pred_fallthru
          _
        // Predicated region
        $region89: #{tpu_custom_call.1} parent=67 // pred_check
          %p527 = pneg %p223
        $region90: #{tpu_custom_call.1} parent=67 // pred_check_branch
          %529 = sbr.rel (%p527) target = $region92
        $region91: #{tpu_custom_call.1} parent=67 // pred_region
          %531 = dma.done [#allocation12], 2048
        $region92: #{tpu_custom_call.1} parent=67 // pred_fallthru
          _
        // Predicated region
        $region93: #{tpu_custom_call.1} parent=67 // pred_check
          %p532 = pneg %p244
        $region94: #{tpu_custom_call.1} parent=67 // pred_check_branch
          %534 = sbr.rel (%p532) target = $region96
        $region95: #{tpu_custom_call.1} parent=67 // pred_region
          %536 = dma.done [#allocation12], 2048
        $region96: #{tpu_custom_call.1} parent=67 // pred_fallthru
          _
        // Predicated region
        $region97: #{tpu_custom_call.1} parent=67 // pred_check
          %p537 = pneg %p286
        $region98: #{tpu_custom_call.1} parent=67 // pred_check_branch
          %539 = sbr.rel (%p537) target = $region100
        $region99: #{tpu_custom_call.1} parent=67 // pred_region
          %541 = dma.done [#allocation15], 2048
        $region100: #{tpu_custom_call.1} parent=67 // pred_fallthru
          _
        %p542 = pneg %p66
        %p543 = pneg %p63
        %s544 = sand.u32 %s33, 1
        %s545 = scalar_lea.sflag [#allocation6], %s544
        %s546 = sand.u32 %s79, 1
        %s547 = scalar_lea.vmem [#allocation5], %s546
        %p548 = pneg %p92
        %p549 = pneg %p89
        %s550 = sand.u32 %s33, 1
        %s551 = scalar_lea.sflag [#allocation6], %s550
        %s552 = sand.u32 %s105, 1
        %s553 = scalar_lea.vmem [#allocation7], %s552
        %p554 = pneg %p118
        %p555 = pneg %p115
        %p556 = pneg %p139
        %p557 = pneg %p136
        %p558 = pneg %p160
        %p559 = pneg %p157
        %p560 = pneg %p181
        %p561 = pneg %p178
        %p562 = pneg %p202
        %p563 = pneg %p199
        %p564 = pneg %p223
        %p565 = pneg %p220
        %p566 = pneg %p244
        %p567 = pneg %p241
        %p568 = pneg %p265
        %p569 = pneg %p262
        %p570 = pneg %p286
        %p571 = pneg %p283
        %p572 = pneg %p307
        %p573 = pneg %p304
        %p574 = pneg %p335
        %p575 = pneg %p332
        %s576 = sand.u32 %s322, 1
        %s577 = scalar_lea.sflag [#allocation4], %s576
        %s578 = sand.u32 %s322, 1
        %s579 = smul.addr %s578, 16
        %s580 = scalar_lea.vmem [#allocation16], %s579
        %s581 = smul.u32 2, %s38
        %s582 = smul.u32 2, %s38
        %v583 = vld [vmem:[#allocation2] sm:$0xff]
        %v584 = vld [vmem:[#allocation2 + $0x8] sm:$0xff]
        %v585 = vld [vmem:[%s502] sm:$0x1]
        %v587 = vperm.slane %v585, 0
        %v589 = vadd.f32 %v583, %v587
        %v590 = vadd.f32 %v584, %v587
        %v591 = vmax.f32 %v589, 0.0
        %v592 = vmax.f32 %v590, 0.0
        %v593 = vld [vmem:[#allocation8] sm:$0xff]
        %v594 = vld [vmem:[#allocation8 + $0x8] sm:$0xff]
        %v595 = vld [vmem:[#allocation8 + $0x10] sm:$0xff]
        %v596 = vld [vmem:[#allocation8 + $0x18] sm:$0xff]
        %v597 = vld [vmem:[#allocation8 + $0x20] sm:$0xff]
        %v598 = vld [vmem:[#allocation8 + $0x28] sm:$0xff]
        %v599 = vld [vmem:[#allocation8 + $0x30] sm:$0xff]
        %v600 = vld [vmem:[#allocation8 + $0x38] sm:$0xff]
        %v601 = vld [vmem:[#allocation8 + $0x40] sm:$0xff]
        %v602 = vld [vmem:[#allocation8 + $0x48] sm:$0xff]
        %v603 = vld [vmem:[#allocation8 + $0x50] sm:$0xff]
        %v604 = vld [vmem:[#allocation8 + $0x58] sm:$0xff]
        %v605 = vld [vmem:[#allocation8 + $0x60] sm:$0xff]
        %v606 = vld [vmem:[#allocation8 + $0x68] sm:$0xff]
        %v607 = vld [vmem:[#allocation8 + $0x70] sm:$0xff]
        %v608 = vld [vmem:[#allocation8 + $0x78] sm:$0xff]
        %v609 = vld [vmem:[%s4] sm:$0x1]
        %v611 = vperm.slane %v609, 0
        %613 = vmatpush.msra.mxu0 %v608
        %614 = vmatpush.msra.mxu0 %v607
        %615 = vmatpush.msra.mxu0 %v606
        %616 = vmatpush.msra.mxu0 %v605
        %617 = vmatpush.msra.mxu0 %v604
        %618 = vmatpush.msra.mxu0 %v603
        %619 = vmatpush.msra.mxu0 %v602
        %620 = vmatpush.msra.mxu0 %v601
        %621 = vmatpush.msra.mxu0 %v600
        %622 = vmatpush.msra.mxu0 %v599
        %623 = vmatpush.msra.mxu0 %v598
        %624 = vmatpush.msra.mxu0 %v597
        %625 = vmatpush.msra.mxu0 %v596
        %626 = vmatpush.msra.mxu0 %v595
        %627 = vmatpush.msra.mxu0 %v594
        %628 = vmatpush.msra.mxu0 %v593
        %629 = vmatmul.f32.gmra.mxu0 %v591
        %v630 = vpop.f32.mrf.mxu0
        %v631 = vadd.f32 %v611, %v630
        %632 = vmatmul.f32.gmra.mxu0 %v592
        %v633 = vpop.f32.mrf.mxu0
        %v634 = vadd.f32 %v611, %v633
        %635 = vdwg.mxu0
        %v636 = vmax.f32 %v631, 0.0
        %v637 = vmax.f32 %v634, 0.0
        %v638 = vld [vmem:[#allocation10] sm:$0xff]
        %v639 = vld [vmem:[#allocation10 + $0x8] sm:$0xff]
        %v640 = vld [vmem:[#allocation10 + $0x10] sm:$0xff]
        %v641 = vld [vmem:[#allocation10 + $0x18] sm:$0xff]
        %v642 = vld [vmem:[#allocation10 + $0x20] sm:$0xff]
        %v643 = vld [vmem:[#allocation10 + $0x28] sm:$0xff]
        %v644 = vld [vmem:[#allocation10 + $0x30] sm:$0xff]
        %v645 = vld [vmem:[#allocation10 + $0x38] sm:$0xff]
        %v646 = vld [vmem:[#allocation10 + $0x40] sm:$0xff]
        %v647 = vld [vmem:[#allocation10 + $0x48] sm:$0xff]
        %v648 = vld [vmem:[#allocation10 + $0x50] sm:$0xff]
        %v649 = vld [vmem:[#allocation10 + $0x58] sm:$0xff]
        %v650 = vld [vmem:[#allocation10 + $0x60] sm:$0xff]
        %v651 = vld [vmem:[#allocation10 + $0x68] sm:$0xff]
        %v652 = vld [vmem:[#allocation10 + $0x70] sm:$0xff]
        %v653 = vld [vmem:[#allocation10 + $0x78] sm:$0xff]
        %v654 = vld [vmem:[%s6] sm:$0x1]
        %v656 = vperm.slane %v654, 0
        %658 = vmatpush.msra.mxu0 %v653
        %659 = vmatpush.msra.mxu0 %v652
        %660 = vmatpush.msra.mxu0 %v651
        %661 = vmatpush.msra.mxu0 %v650
        %662 = vmatpush.msra.mxu0 %v649
        %663 = vmatpush.msra.mxu0 %v648
        %664 = vmatpush.msra.mxu0 %v647
        %665 = vmatpush.msra.mxu0 %v646
        %666 = vmatpush.msra.mxu0 %v645
        %667 = vmatpush.msra.mxu0 %v644
        %668 = vmatpush.msra.mxu0 %v643
        %669 = vmatpush.msra.mxu0 %v642
        %670 = vmatpush.msra.mxu0 %v641
        %671 = vmatpush.msra.mxu0 %v640
        %672 = vmatpush.msra.mxu0 %v639
        %673 = vmatpush.msra.mxu0 %v638
        %674 = vmatmul.f32.gmra.mxu0 %v636
        %v675 = vpop.f32.mrf.mxu0
        %v676 = vadd.f32 %v656, %v675
        %677 = vmatmul.f32.gmra.mxu0 %v637
        %v678 = vpop.f32.mrf.mxu0
        %v679 = vadd.f32 %v656, %v678
        %680 = vdwg.mxu0
        %v681 = vld [vmem:[#allocation11] sm:$0xff]
        %v682 = vld [vmem:[#allocation11 + $0x8] sm:$0xff]
        %v683 = vld [vmem:[#allocation11 + $0x10] sm:$0xff]
        %v684 = vld [vmem:[#allocation11 + $0x18] sm:$0xff]
        %v685 = vld [vmem:[#allocation11 + $0x20] sm:$0xff]
        %v686 = vld [vmem:[#allocation11 + $0x28] sm:$0xff]
        %v687 = vld [vmem:[#allocation11 + $0x30] sm:$0xff]
        %v688 = vld [vmem:[#allocation11 + $0x38] sm:$0xff]
        %v689 = vld [vmem:[#allocation11 + $0x40] sm:$0xff]
        %v690 = vld [vmem:[#allocation11 + $0x48] sm:$0xff]
        %v691 = vld [vmem:[#allocation11 + $0x50] sm:$0xff]
        %v692 = vld [vmem:[#allocation11 + $0x58] sm:$0xff]
        %v693 = vld [vmem:[#allocation11 + $0x60] sm:$0xff]
        %v694 = vld [vmem:[#allocation11 + $0x68] sm:$0xff]
        %v695 = vld [vmem:[#allocation11 + $0x70] sm:$0xff]
        %v696 = vld [vmem:[#allocation11 + $0x78] sm:$0xff]
        %v697 = vld [vmem:[%s511] sm:$0x1]
        %v699 = vperm.slane %v697, 0
        %701 = vmatpush.msra.mxu0 %v696
        %702 = vmatpush.msra.mxu0 %v695
        %703 = vmatpush.msra.mxu0 %v694
        %704 = vmatpush.msra.mxu0 %v693
        %705 = vmatpush.msra.mxu0 %v692
        %706 = vmatpush.msra.mxu0 %v691
        %707 = vmatpush.msra.mxu0 %v690
        %708 = vmatpush.msra.mxu0 %v689
        %709 = vmatpush.msra.mxu0 %v688
        %710 = vmatpush.msra.mxu0 %v687
        %711 = vmatpush.msra.mxu0 %v686
        %712 = vmatpush.msra.mxu0 %v685
        %713 = vmatpush.msra.mxu0 %v684
        %714 = vmatpush.msra.mxu0 %v683
        %715 = vmatpush.msra.mxu0 %v682
        %716 = vmatpush.msra.mxu0 %v681
        %717 = vmatmul.f32.gmra.mxu0 %v676
        %v718 = vpop.f32.mrf.mxu0
        %v719 = vadd.f32 %v699, %v718
        %720 = vmatmul.f32.gmra.mxu0 %v679
        %v721 = vpop.f32.mrf.mxu0
        %v722 = vadd.f32 %v699, %v721
        %723 = vdwg.mxu0
        %v724 = vmax.f32 %v719, 0.0
        %v725 = vmax.f32 %v722, 0.0
        %v726 = vld [vmem:[#allocation13] sm:$0xff]
        %v727 = vld [vmem:[#allocation13 + $0x8] sm:$0xff]
        %v728 = vld [vmem:[#allocation13 + $0x10] sm:$0xff]
        %v729 = vld [vmem:[#allocation13 + $0x18] sm:$0xff]
        %v730 = vld [vmem:[#allocation13 + $0x20] sm:$0xff]
        %v731 = vld [vmem:[#allocation13 + $0x28] sm:$0xff]
        %v732 = vld [vmem:[#allocation13 + $0x30] sm:$0xff]
        %v733 = vld [vmem:[#allocation13 + $0x38] sm:$0xff]
        %v734 = vld [vmem:[#allocation13 + $0x40] sm:$0xff]
        %v735 = vld [vmem:[#allocation13 + $0x48] sm:$0xff]
        %v736 = vld [vmem:[#allocation13 + $0x50] sm:$0xff]
        %v737 = vld [vmem:[#allocation13 + $0x58] sm:$0xff]
        %v738 = vld [vmem:[#allocation13 + $0x60] sm:$0xff]
        %v739 = vld [vmem:[#allocation13 + $0x68] sm:$0xff]
        %v740 = vld [vmem:[#allocation13 + $0x70] sm:$0xff]
        %v741 = vld [vmem:[#allocation13 + $0x78] sm:$0xff]
        %v742 = vld [vmem:[%s9] sm:$0x1]
        %v744 = vperm.slane %v742, 0
        %746 = vmatpush.msra.mxu0 %v741
        %747 = vmatpush.msra.mxu0 %v740
        %748 = vmatpush.msra.mxu0 %v739
        %749 = vmatpush.msra.mxu0 %v738
        %750 = vmatpush.msra.mxu0 %v737
        %751 = vmatpush.msra.mxu0 %v736
        %752 = vmatpush.msra.mxu0 %v735
        %753 = vmatpush.msra.mxu0 %v734
        %754 = vmatpush.msra.mxu0 %v733
        %755 = vmatpush.msra.mxu0 %v732
        %756 = vmatpush.msra.mxu0 %v731
        %757 = vmatpush.msra.mxu0 %v730
        %758 = vmatpush.msra.mxu0 %v729
        %759 = vmatpush.msra.mxu0 %v728
        %760 = vmatpush.msra.mxu0 %v727
        %761 = vmatpush.msra.mxu0 %v726
        %762 = vmatmul.f32.gmra.mxu0 %v724
        %v763 = vpop.f32.mrf.mxu0
        %v764 = vadd.f32 %v744, %v763
        %765 = vmatmul.f32.gmra.mxu0 %v725
        %v766 = vpop.f32.mrf.mxu0
        %v767 = vadd.f32 %v744, %v766
        %768 = vdwg.mxu0
        %v769 = vmax.f32 %v764, 0.0
        %v770 = vmax.f32 %v767, 0.0
        %v771 = vld [vmem:[#allocation14] sm:$0xff]
        %v772 = vld [vmem:[#allocation14 + $0x8] sm:$0xff]
        %v773 = vld [vmem:[#allocation14 + $0x10] sm:$0xff]
        %v774 = vld [vmem:[#allocation14 + $0x18] sm:$0xff]
        %v775 = vld [vmem:[#allocation14 + $0x20] sm:$0xff]
        %v776 = vld [vmem:[#allocation14 + $0x28] sm:$0xff]
        %v777 = vld [vmem:[#allocation14 + $0x30] sm:$0xff]
        %v778 = vld [vmem:[#allocation14 + $0x38] sm:$0xff]
        %v779 = vld [vmem:[#allocation14 + $0x40] sm:$0xff]
        %v780 = vld [vmem:[#allocation14 + $0x48] sm:$0xff]
        %v781 = vld [vmem:[#allocation14 + $0x50] sm:$0xff]
        %v782 = vld [vmem:[#allocation14 + $0x58] sm:$0xff]
        %v783 = vld [vmem:[#allocation14 + $0x60] sm:$0xff]
        %v784 = vld [vmem:[#allocation14 + $0x68] sm:$0xff]
        %v785 = vld [vmem:[#allocation14 + $0x70] sm:$0xff]
        %v786 = vld [vmem:[#allocation14 + $0x78] sm:$0xff]
        %v787 = vld [vmem:[%s11] sm:$0x1]
        %v789 = vperm.slane %v787, 0
        %791 = vmatpush.msra.mxu0 %v786
        %792 = vmatpush.msra.mxu0 %v785
        %793 = vmatpush.msra.mxu0 %v784
        %794 = vmatpush.msra.mxu0 %v783
        %795 = vmatpush.msra.mxu0 %v782
        %796 = vmatpush.msra.mxu0 %v781
        %797 = vmatpush.msra.mxu0 %v780
        %798 = vmatpush.msra.mxu0 %v779
        %799 = vmatpush.msra.mxu0 %v778
        %800 = vmatpush.msra.mxu0 %v777
        %801 = vmatpush.msra.mxu0 %v776
        %802 = vmatpush.msra.mxu0 %v775
        %803 = vmatpush.msra.mxu0 %v774
        %804 = vmatpush.msra.mxu0 %v773
        %805 = vmatpush.msra.mxu0 %v772
        %806 = vmatpush.msra.mxu0 %v771
        %807 = vmatmul.f32.gmra.mxu0 %v769
        %v808 = vpop.f32.mrf.mxu0
        %v809 = vadd.f32 %v789, %v808
        %810 = vmatmul.f32.gmra.mxu0 %v770
        %v811 = vpop.f32.mrf.mxu0
        %v812 = vadd.f32 %v789, %v811
        %813 = vdwg.mxu0
        %814 = vst [vmem:[%s580] sm:$0xff] %v809
        %815 = vst [vmem:[%s580 + $0x8] sm:$0xff] %v812
        %s816 = sand.u32 %s322, 1
        %s817 = scalar_lea.sflag [#allocation4], %s816
        %s818 = sand.u32 %s322, 1
        %s819 = smul.addr %s818, 16
        %s820 = scalar_lea.vmem [#allocation16], %s819
        // Predicated region
        $region101: #{tpu_custom_call.1} parent=67 // pred_check
          %p821 = pneg %p332
        $region102: #{tpu_custom_call.1} parent=67 // pred_check_branch
          %823 = sbr.rel (%p821) target = $region104
        $region103: #{tpu_custom_call.1} parent=67 // pred_region
          %s824 = smul.u32 2, %s38
          %826 = vsyncadd %s817, 0
          %s827 = smul.addr %s37, 2
          %s828 = sadd.s32 %s824, %s827
          %s829 = smul.addr %s828, 8
          %s830 = scalar_lea.hbm %s12, %s829
          %s831 = sshll.u32 %s820, 4
          %s832 = int_to_ptr.vmem [resolvable:$true] %s831
          %s833 = sshll.u32 %s830, 4
          %s834 = int_to_ptr.hbm [resolvable:$true] %s833
          %839 = dma.vmem_to_hbm [thread:$0]  %s832, 256, %s834, %s817, 128, 128, 8
        $region104: #{tpu_custom_call.1} parent=67 // pred_fallthru
          _
      $region68: #{tpu_custom_call.1} parent=5 // pred_fallthru
        _
      %p840 = scmp.le.s32.totalorder 2, %s28
      // Predicated region
      $region105: #{tpu_custom_call.1} parent=5 // pred_check
        %p841 = pneg %p840
      $region106: #{tpu_custom_call.1} parent=5 // pred_check_branch
        %843 = sbr.rel (%p841) target = $region108
      $region107: #{tpu_custom_call.1} parent=5 // pred_region
        %s844 = ssub.s32 %s28, 2
        // Predicated region
        $region109: #{tpu_custom_call.1} parent=107 // pred_check
          %p845 = pneg %p338
        $region110: #{tpu_custom_call.1} parent=107 // pred_check_branch
          %847 = sbr.rel (%p845) target = $region112
        $region111: #{tpu_custom_call.1} parent=107 // pred_region
          %s848 = sand.u32 %s323, 1
          %s849 = scalar_lea.sflag [#allocation4], %s848
          %s850 = sand.u32 %s323, 1
          %s851 = smul.addr %s850, 16
          %s852 = scalar_lea.vmem [#allocation16], %s851
          %854 = dma.done %s849, 256
        $region112: #{tpu_custom_call.1} parent=107 // pred_fallthru
          _
      $region108: #{tpu_custom_call.1} parent=5 // pred_fallthru
        _
    $region6: #{tpu_custom_call.1} parent=1 // loop_footer
      %s32 = sadd.s32 1, %s28
    $region7: #{tpu_custom_call.1} parent=1 // loop_footer_branch
      %27 = sbr.rel target = $region3
    $region8: #{tpu_custom_call.1} parent=1 // loop_exit
      _
    %855 = vsyncpa [#allocation3], 1
    %s856 = scalar_lea.sflag [#allocation3], 1
    %857 = vsyncpa %s856, 1
    %858 = vsyncpa [#allocation6], 1
    %s859 = scalar_lea.sflag [#allocation6], 1
    %860 = vsyncpa %s859, 1
    %861 = vsyncpa [#allocation9], 1
    %862 = vsyncpa [#allocation12], 1
    %863 = vsyncpa [#allocation15], 1
    %864 = vsyncpa [#allocation4], 1
    %s865 = scalar_lea.sflag [#allocation4], 1
    %866 = vsyncpa %s865, 1

</llo_original>
